<compile_context>
chip_gen: v5e
topology: v5e:2x2
jax: 0.10.0
libtpu: 0.0.40
codegen_flags: <defaults>
</compile_context>

<pallas_src>
import functools

import jax
import jax.numpy as jnp
from jax.experimental import pallas as pl
from jax.experimental.pallas import tpu as pltpu


def _soft_ce_kernel(x_ref, t_ref, out_ref, acc_ref, *, n_rows, g_inner,
                    targets_normalized):
    """Accumulates per-row soft cross entropy; flushes one partial sum per outer index."""
    o = pl.program_id(0)          # partial axis ("parallel" -> sharded across cores)
    i = pl.program_id(1)          # row-block axis ("arbitrary" reduction)
    tm = x_ref.shape[0]

    @pl.when(i == 0)
    def _init():
        acc_ref[...] = jnp.zeros_like(acc_ref)

    # Numerically-stable log-softmax, algebraically folded so the (tm, C)
    # log-prob tensor is never materialized:
    #   -sum(t * (s - lse)) = lse * sum(t) - sum(s * t),  with s = x - max(x)
    # Casts of narrow inputs are folded into the consuming ops; only `s` is a
    # full-tile f32 temporary.
    x = x_ref[...]                                                   # native dtype
    m = jnp.max(x, axis=-1, keepdims=True).astype(jnp.float32)       # (tm, 1)
    s = x.astype(jnp.float32) - m                                    # (tm, C) f32
    lse = jnp.log(jnp.sum(jnp.exp(s), axis=-1, keepdims=True))       # (tm, 1)
    st_sum = jnp.sum(s * t_ref[...], axis=-1, keepdims=True)         # (tm, 1) f32
    if targets_normalized:
        row_loss = lse - st_sum                                      # sum(t) == 1
    else:
        t_sum = jnp.sum(t_ref[...].astype(jnp.float32), axis=-1, keepdims=True)
        row_loss = lse * t_sum - st_sum                              # (tm, 1)

    base = (o * g_inner + i) * tm

    # Fast path: interior full blocks need no row mask (taken almost always).
    @pl.when(base + tm <= n_rows)
    def _full():
        acc_ref[...] += jnp.sum(row_loss)

    # Slow path: partial tail block and/or clamped duplicate blocks only.
    @pl.when(base + tm > n_rows)
    def _tail():
        row_ids = base + jax.lax.broadcasted_iota(jnp.int32, (tm, 1), 0)
        acc_ref[...] += jnp.sum(jnp.where(row_ids < n_rows, row_loss, 0.0))

    @pl.when(i == g_inner - 1)
    def _flush():
        out_ref[...] = jnp.broadcast_to(jnp.sum(acc_ref[...]), out_ref.shape)


def _vmem_capacity_bytes():
    """Per-core VMEM capacity; falls back to the smallest production value (v7x: 64 MiB)."""
    try:
        cap = int(pltpu.get_tpu_info().vmem_capacity_bytes)
        if cap > 0:
            return cap
    except Exception:
        pass
    return 64 * 1024 * 1024


def _num_tensorcores():
    """TensorCores addressable by one pallas_call (1 on v5e/v6e, 2 on v7x)."""
    try:
        info = pltpu.get_tpu_info()
        for name in ("num_cores", "core_count", "num_tensorcores"):
            v = getattr(info, name, None)
            if v:
                return max(1, min(8, int(v)))
    except Exception:
        pass
    # Safe fallback: with n_partials == 2 at most ONE duplicate block is re-DMAed.
    return 2


@functools.partial(jax.jit, static_argnames=("tm", "targets_normalized"))
def soft_cross_entropy_loss(inputs, targets, *, tm=None, targets_normalized=False):
    """Pallas implementation of SoftCrossEntropyLoss.forward.

    inputs, targets: same shape (..., C). Returns a scalar f32 loss.
    `tm` (optional, static) overrides the auto-sized row tile (for testing).
    `targets_normalized=True` (static) asserts sum(target, -1) == 1 and skips
    that reduce; default False matches the PyTorch module exactly.
    """
    assert inputs.shape == targets.shape
    C = inputs.shape[-1]
    x2 = inputs.reshape(-1, C)
    t2 = targets.reshape(-1, C)
    N = x2.shape[0]

    # ---- VMEM budget & tile sizing (all trace-time Python ints) -------------
    vmem_cap = _vmem_capacity_bytes()                           # 64 MiB (v7x) / 128 MiB (v5e, v6e)
    vmem_limit = min((vmem_cap * 3) // 4, 96 * 1024 * 1024)     # 48 MiB / 96 MiB
    tile_budget = vmem_limit - 8 * 1024 * 1024                  # headroom: output slab, acc, misc

    if tm is None:
        # Honest per-row footprint: 2 pipeline buffers for each input PLUS the
        # in-kernel f32 temporaries (s, exp(s), s*t, fused-cast headroom).
        f32_temp_passes = 5
        bytes_per_row = (2 * C * (x2.dtype.itemsize + t2.dtype.itemsize)
                         + f32_temp_passes * C * 4)
        tm = tile_budget // max(bytes_per_row, 1)
        tm = max(8, min(4096, (tm // 8) * 8))
    if N <= 8:
        tm = N                               # block == full row extent (allowed)
    else:
        tm = min(tm, ((N + 7) // 8) * 8)     # multiple of 8, no bigger than needed
    # TODO(synk): for vocab-scale C (where even tm=8 blows the VMEM budget,
    # especially v7x's 64 MiB) add a C-tiling grid axis with a streaming
    # log-sum-exp instead of holding whole rows in VMEM.

    num_blocks = -(-N // tm)
    n_partials = min(num_blocks, _num_tensorcores())
    g_inner = -(-num_blocks // n_partials)

    def _in_map(o, i):
        # Clamp the (at most n_partials - 1) duplicate tail iterations onto the
        # last valid block; their rows are masked in-kernel so they contribute
        # exactly 0.  Avoids issuing out-of-bounds DMAs.
        b = jnp.minimum(o * g_inner + i, num_blocks - 1)
        return (b, 0)

    kernel = functools.partial(_soft_ce_kernel, n_rows=N, g_inner=g_inner,
                               targets_normalized=targets_normalized)

    partials = pl.pallas_call(
        kernel,
        out_shape=jax.ShapeDtypeStruct((n_partials, 8, 128), jnp.float32),
        grid_spec=pltpu.PrefetchScalarGridSpec(
            num_scalar_prefetch=0,
            grid=(n_partials, g_inner),
            in_specs=[
                pl.BlockSpec((tm, C), _in_map),
                pl.BlockSpec((tm, C), _in_map),
            ],
            out_specs=pl.BlockSpec((1, 8, 128), lambda o, i: (o, 0, 0)),
            scratch_shapes=[pltpu.VMEM((1, 1), jnp.float32)],
        ),
        compiler_params=pltpu.CompilerParams(
            dimension_semantics=("parallel", "arbitrary"),
            vmem_limit_bytes=int(vmem_limit),
        ),
    )(x2, t2)

    total = jnp.sum(partials[:, 0, 0])
    # Mean over the *original* number of rows (torch.mean over all leading dims).
    return (total / jnp.float32(N)).astype(jnp.float32)


def _reference(inputs, targets):
    logp = jax.nn.log_softmax(inputs.astype(jnp.float32), axis=-1)
    per_row = -jnp.sum(logp * targets.astype(jnp.float32), axis=-1)
    return jnp.mean(per_row)


if __name__ == "__main__":
    k = jax.random.split(jax.random.PRNGKey(0), 6)

    # Test 1: nominal small shape from the module (batch=2, seq=8, classes=32).
    x1 = jax.random.normal(k[0], (2, 8, 32), dtype=jnp.float32)
    t1 = jax.nn.softmax(jax.random.normal(k[1], (2, 8, 32), dtype=jnp.float32), axis=-1)
    out1 = soft_cross_entropy_loss(x1, t1)
    jax.block_until_ready(out1)
    ref1 = _reference(x1, t1)
    assert jnp.allclose(out1, ref1, rtol=1e-5, atol=1e-5), (out1, ref1)

    # Test 1b: same data through the targets_normalized fast path (t1 is softmax).
    out1b = soft_cross_entropy_loss(x1, t1, targets_normalized=True)
    jax.block_until_ready(out1b)
    assert jnp.allclose(out1b, ref1, rtol=1e-5, atol=1e-5), (out1b, ref1)

    # Test 2: row count not a multiple of the tile -> exercises the guarded
    # in-kernel tail mask and the multi-partial ("parallel") output path.
    x2 = jax.random.normal(k[2], (2, 37, 64), dtype=jnp.float32)
    t2 = jax.nn.softmax(jax.random.normal(k[3], (2, 37, 64), dtype=jnp.float32), axis=-1)
    out2 = soft_cross_entropy_loss(x2, t2, tm=16)
    jax.block_until_ready(out2)
    ref2 = _reference(x2, t2)
    assert jnp.allclose(out2, ref2, rtol=1e-5, atol=1e-5), (out2, ref2)

    # Test 3: num_blocks (9) not divisible by n_partials -> exercises the single
    # clamped duplicate-block path, plus bf16 inputs (halved HBM traffic).
    x3 = jax.random.normal(k[4], (9, 16, 64), dtype=jnp.float32).astype(jnp.bfloat16)
    t3 = jax.nn.softmax(jax.random.normal(k[5], (9, 16, 64), dtype=jnp.float32), axis=-1
                        ).astype(jnp.bfloat16)
    out3 = soft_cross_entropy_loss(x3, t3, tm=16)
    jax.block_until_ready(out3)
    ref3 = _reference(x3, t3)
    assert jnp.allclose(out3, ref3, rtol=1e-4, atol=1e-4), (out3, ref3)

    print("KERNEL_OK")
</pallas_src>

<mosaic_0001>
module attributes {stable_mosaic.version = 11 : i64} {
  func.func @_soft_ce_kernel(%arg0: i32, %arg1: i32, %arg2: memref<16x32xf32, #tpu.memory_space<vmem>>, %arg3: memref<16x32xf32, #tpu.memory_space<vmem>>, %arg4: memref<1x8x128xf32, #tpu.memory_space<vmem>>, %arg5: memref<1x1xf32, #tpu.memory_space<vmem>>) attributes {dimension_semantics = [#tpu.dimension_semantics<parallel>, #tpu.dimension_semantics<arbitrary>], iteration_bounds = array<i64: 1, 1>, scalar_prefetch = 0 : i64, scratch_operands = 1 : i64, tpu.core_type = #tpu.core_type<tc>, window_params = [{transform_indices = @transform_0, window_bounds = array<i64: 16, 32>}, {transform_indices = @transform_1, window_bounds = array<i64: 16, 32>}, {transform_indices = @transform_2, window_bounds = array<i64: 1, 8, 128>}]} {
    %c0_i32 = arith.constant 0 : i32
    %0 = arith.cmpi eq, %arg1, %c0_i32 : i32
    %1 = arith.extui %0 : i1 to i32
    %c0_i32_0 = arith.constant 0 : i32
    %2 = arith.cmpi ne, %1, %c0_i32_0 : i32
    scf.if %2 {
      %cst_17 = arith.constant 0.000000e+00 : f32
      %35 = vector.broadcast %cst_17 : f32 to vector<1x1xf32>
      %c0_18 = arith.constant 0 : index
      %c0_19 = arith.constant 0 : index
      %36 = vector.load %arg5[%c0_18, %c0_19] : memref<1x1xf32, #tpu.memory_space<vmem>>, vector<1x1xf32>
      tpu.vector_store %arg5[%c0_18, %c0_19], %35 {strides = array<i32>} : memref<1x1xf32, #tpu.memory_space<vmem>>, vector<1x1xf32>,
    } else {
    }
    %c0 = arith.constant 0 : index
    %c0_1 = arith.constant 0 : index
    %3 = vector.load %arg2[%c0, %c0_1] : memref<16x32xf32, #tpu.memory_space<vmem>>, vector<16x32xf32>
    %cst = arith.constant dense<0xFF800000> : vector<16xf32>
    %4 = vector.multi_reduction <maximumf>, %3, %cst [1] : vector<16x32xf32> to vector<16xf32>
    %5 = vector.shape_cast %4 : vector<16xf32> to vector<16x1xf32>
    %6 = vector.broadcast %5 : vector<16x1xf32> to vector<16x32xf32>
    %7 = arith.subf %3, %6 : vector<16x32xf32>
    %8 = math.exp %7 : vector<16x32xf32>
    %cst_2 = arith.constant dense<0.000000e+00> : vector<16xf32>
    %9 = vector.multi_reduction <add>, %8, %cst_2 [1] : vector<16x32xf32> to vector<16xf32>
    %10 = vector.shape_cast %9 : vector<16xf32> to vector<16x1xf32>
    %11 = math.log %10 : vector<16x1xf32>
    %c0_3 = arith.constant 0 : index
    %c0_4 = arith.constant 0 : index
    %12 = vector.load %arg3[%c0_3, %c0_4] : memref<16x32xf32, #tpu.memory_space<vmem>>, vector<16x32xf32>
    %13 = arith.mulf %7, %12 : vector<16x32xf32>
    %cst_5 = arith.constant dense<0.000000e+00> : vector<16xf32>
    %14 = vector.multi_reduction <add>, %13, %cst_5 [1] : vector<16x32xf32> to vector<16xf32>
    %15 = vector.shape_cast %14 : vector<16xf32> to vector<16x1xf32>
    %c0_6 = arith.constant 0 : index
    %c0_7 = arith.constant 0 : index
    %16 = vector.load %arg3[%c0_6, %c0_7] : memref<16x32xf32, #tpu.memory_space<vmem>>, vector<16x32xf32>
    %cst_8 = arith.constant dense<0.000000e+00> : vector<16xf32>
    %17 = vector.multi_reduction <add>, %16, %cst_8 [1] : vector<16x32xf32> to vector<16xf32>
    %18 = vector.shape_cast %17 : vector<16xf32> to vector<16x1xf32>
    %19 = arith.mulf %11, %18 : vector<16x1xf32>
    %20 = arith.subf %19, %15 : vector<16x1xf32>
    %c1_i32 = arith.constant 1 : i32
    %21 = arith.muli %arg0, %c1_i32 : i32
    %22 = arith.addi %21, %arg1 : i32
    %c16_i32 = arith.constant 16 : i32
    %23 = arith.muli %22, %c16_i32 : i32
    %c16_i32_9 = arith.constant 16 : i32
    %24 = arith.addi %23, %c16_i32_9 : i32
    %c16_i32_10 = arith.constant 16 : i32
    %25 = arith.cmpi sle, %24, %c16_i32_10 : i32
    %26 = arith.extui %25 : i1 to i32
    %c0_i32_11 = arith.constant 0 : i32
    %27 = arith.cmpi ne, %26, %c0_i32_11 : i32
    scf.if %27 {
      %c0_17 = arith.constant 0 : index
      %c0_18 = arith.constant 0 : index
      %35 = vector.load %arg5[%c0_17, %c0_18] : memref<1x1xf32, #tpu.memory_space<vmem>>, vector<1x1xf32>
      %36 = vector.shape_cast %20 : vector<16x1xf32> to vector<1x16x1xf32>
      %cst_19 = arith.constant dense<0.000000e+00> : vector<1xf32>
      %37 = vector.multi_reduction <add>, %36, %cst_19 [1, 2] : vector<1x16x1xf32> to vector<1xf32>
      %38 = vector.shape_cast %37 : vector<1xf32> to vector<1x1x1xf32>
      %39 = vector.extract %38[0, 0, 0] : f32 from vector<1x1x1xf32>
      %40 = vector.broadcast %39 : f32 to vector<1x1xf32>
      %41 = arith.addf %35, %40 : vector<1x1xf32>
      %c0_20 = arith.constant 0 : index
      %c0_21 = arith.constant 0 : index
      %42 = vector.load %arg5[%c0_20, %c0_21] : memref<1x1xf32, #tpu.memory_space<vmem>>, vector<1x1xf32>
      tpu.vector_store %arg5[%c0_20, %c0_21], %41 {strides = array<i32>} : memref<1x1xf32, #tpu.memory_space<vmem>>, vector<1x1xf32>,
    } else {
    }
    %c16_i32_12 = arith.constant 16 : i32
    %28 = arith.addi %23, %c16_i32_12 : i32
    %c16_i32_13 = arith.constant 16 : i32
    %29 = arith.cmpi sgt, %28, %c16_i32_13 : i32
    %30 = arith.extui %29 : i1 to i32
    %c0_i32_14 = arith.constant 0 : i32
    %31 = arith.cmpi ne, %30, %c0_i32_14 : i32
    scf.if %31 {
      %35 = tpu.iota {dimensions = array<i32: 0>} : vector<16x1xi32>
      %36 = vector.broadcast %23 : i32 to vector<16x1xi32>
      %37 = arith.addi %36, %35 : vector<16x1xi32>
      %c0_17 = arith.constant 0 : index
      %c0_18 = arith.constant 0 : index
      %38 = vector.load %arg5[%c0_17, %c0_18] : memref<1x1xf32, #tpu.memory_space<vmem>>, vector<1x1xf32>
      %c16_i32_19 = arith.constant 16 : i32
      %39 = vector.broadcast %c16_i32_19 : i32 to vector<16x1xi32>
      %40 = arith.cmpi slt, %37, %39 : vector<16x1xi32>
      %cst_20 = arith.constant 0.000000e+00 : f32
      %41 = vector.broadcast %cst_20 : f32 to vector<16x1xf32>
      %42 = arith.select %40, %20, %41 : vector<16x1xi1>, vector<16x1xf32>
      %43 = vector.shape_cast %42 : vector<16x1xf32> to vector<1x16x1xf32>
      %cst_21 = arith.constant dense<0.000000e+00> : vector<1xf32>
      %44 = vector.multi_reduction <add>, %43, %cst_21 [1, 2] : vector<1x16x1xf32> to vector<1xf32>
      %45 = vector.shape_cast %44 : vector<1xf32> to vector<1x1x1xf32>
      %46 = vector.extract %45[0, 0, 0] : f32 from vector<1x1x1xf32>
      %47 = vector.broadcast %46 : f32 to vector<1x1xf32>
      %48 = arith.addf %38, %47 : vector<1x1xf32>
      %c0_22 = arith.constant 0 : index
      %c0_23 = arith.constant 0 : index
      %49 = vector.load %arg5[%c0_22, %c0_23] : memref<1x1xf32, #tpu.memory_space<vmem>>, vector<1x1xf32>
      tpu.vector_store %arg5[%c0_22, %c0_23], %48 {strides = array<i32>} : memref<1x1xf32, #tpu.memory_space<vmem>>, vector<1x1xf32>,
    } else {
    }
    %c0_i32_15 = arith.constant 0 : i32
    %32 = arith.cmpi eq, %arg1, %c0_i32_15 : i32
    %33 = arith.extui %32 : i1 to i32
    %c0_i32_16 = arith.constant 0 : i32
    %34 = arith.cmpi ne, %33, %c0_i32_16 : i32
    scf.if %34 {
      %c0_17 = arith.constant 0 : index
      %c0_18 = arith.constant 0 : index
      %35 = vector.load %arg5[%c0_17, %c0_18] : memref<1x1xf32, #tpu.memory_space<vmem>>, vector<1x1xf32>
      %36 = vector.shape_cast %35 : vector<1x1xf32> to vector<1x1x1xf32>
      %cst_19 = arith.constant dense<0.000000e+00> : vector<1xf32>
      %37 = vector.multi_reduction <add>, %36, %cst_19 [1, 2] : vector<1x1x1xf32> to vector<1xf32>
      %38 = vector.shape_cast %37 : vector<1xf32> to vector<1x1x1xf32>
      %39 = vector.extract %38[0, 0, 0] : f32 from vector<1x1x1xf32>
      %40 = vector.broadcast %39 : f32 to vector<1x8x128xf32>
      %c0_20 = arith.constant 0 : index
      %c0_21 = arith.constant 0 : index
      %c0_22 = arith.constant 0 : index
      %41 = vector.load %arg4[%c0_20, %c0_21, %c0_22] : memref<1x8x128xf32, #tpu.memory_space<vmem>>, vector<1x8x128xf32>
      tpu.vector_store %arg4[%c0_20, %c0_21, %c0_22], %40 {strides = array<i32>} : memref<1x8x128xf32, #tpu.memory_space<vmem>>, vector<1x8x128xf32>,
    } else {
    }
    return
  }
  func.func @transform_0(%arg0: i32, %arg1: i32) -> (i32, i32) {
    %c1_i32 = arith.constant 1 : i32
    %0 = arith.muli %arg0, %c1_i32 : i32
    %1 = arith.addi %0, %arg1 : i32
    %c0_i32 = arith.constant 0 : i32
    %2 = arith.minsi %1, %c0_i32 : i32
    %c0_i32_0 = arith.constant 0 : i32
    %c0_i32_1 = arith.constant 0 : i32
    return %2, %c0_i32_0 : i32, i32
  }
  func.func @transform_1(%arg0: i32, %arg1: i32) -> (i32, i32) {
    %c1_i32 = arith.constant 1 : i32
    %0 = arith.muli %arg0, %c1_i32 : i32
    %1 = arith.addi %0, %arg1 : i32
    %c0_i32 = arith.constant 0 : i32
    %2 = arith.minsi %1, %c0_i32 : i32
    %c0_i32_0 = arith.constant 0 : i32
    %c0_i32_1 = arith.constant 0 : i32
    return %2, %c0_i32_0 : i32, i32
  }
  func.func @transform_2(%arg0: i32, %arg1: i32) -> (i32, i32, i32) {
    %c0_i32 = arith.constant 0 : i32
    %c0_i32_0 = arith.constant 0 : i32
    %c0_i32_1 = arith.constant 0 : i32
    return %arg0, %c0_i32, %c0_i32_0 : i32, i32, i32
  }
}

</mosaic_0001>

<llo_original>
// kernel: soft_cross_entropy_loss.1
$region0: #{soft_cross_entropy_loss.1}
  #allocation0 [shape = 'u32[]', space=smem, size = 0x4, offset = 0x4, fixed_abs, tag = 'smem constant byte address 0x4 - core index']
  #allocation1 [shape = 'u32[72,128]{1,0:T(1,128)}', space=vmem, size = 0x9000, scoped, tag = 'internal scratch']
  #allocation2 [shape = 'f32[1,1]{1,0:T(1,128)}', space=vmem, size = 0x200, scoped, tag = 'scratch operand']
  %s0 = inlined_call_operand.hbm [shape: f32[16,32], index: 0, kind: input, shape index: {}]
  %s1 = inlined_call_operand.hbm [shape: f32[16,32], index: 1, kind: input, shape index: {}]
  %s2 = inlined_call_operand.vmem [shape: f32[1,8,128], index: 2, kind: output, shape index: {}]
  %s3 = sld [smem:[#allocation0]]
  $region42: #{soft_cross_entropy_loss.1} parent=0
    _
  %s5 = ssub.s32 1, %s3
  %s6 = scalar_select 0, %s5, %s3
  $region1: #{soft_cross_entropy_loss.1} parent=0
    #allocation3 [shape = 'u8[8192]{0}', space=vmem, size = 0x2000, scoped, tag = 'input window, operand 0, single buffered']
    #allocation4 [shape = 's32[1]{0}', space=sflag, size = 0x4, scoped, tag = 'scoped memory for soft_cross_entropy_loss.1']
    #allocation5 [shape = 'u8[8192]{0}', space=vmem, size = 0x2000, scoped, tag = 'input window, operand 1, single buffered']
    #allocation6 [shape = 's32[1]{0}', space=sflag, size = 0x4, scoped, tag = 'scoped memory for soft_cross_entropy_loss.1']
    %7 = vsyncpa [#allocation4], 0
    %8 = vsyncpa [#allocation6], 0
    // Predicated region
    $region2: #{soft_cross_entropy_loss.1} parent=1 // pred_check
      _
    $region3: #{soft_cross_entropy_loss.1} parent=1 // pred_check_branch
      %10 = sbr.rel (0) target = $region5
    $region4: #{soft_cross_entropy_loss.1} parent=1 // pred_region
      %s11 = sadd.s32 0, 0
      %p12 = scmp.lt.s32.totalorder %s11, 0
      %s13 = scalar_select %p12, %s11, 0
      %s14 = smul.u32 2, %s13
      %16 = vsyncadd [#allocation4], 0
      %s17 = smul.addr %s14, 8
      %s18 = scalar_lea.hbm %s0, %s17
      %s19 = sshll.u32 %s18, 4
      %s20 = int_to_ptr.hbm [resolvable:$true] %s19
      %s21 = sshll.u32 [#allocation3], 4
      %s22 = int_to_ptr.vmem [resolvable:$true] %s21
      %27 = dma.hbm_to_vmem [thread:$0]  %s20, 256, %s22, [#allocation4], 128, 128, 8
    $region5: #{soft_cross_entropy_loss.1} parent=1 // pred_fallthru
      _
    // Predicated region
    $region6: #{soft_cross_entropy_loss.1} parent=1 // pred_check
      _
    $region7: #{soft_cross_entropy_loss.1} parent=1 // pred_check_branch
      %29 = sbr.rel (0) target = $region9
    $region8: #{soft_cross_entropy_loss.1} parent=1 // pred_region
      %s30 = sadd.s32 0, 0
      %p31 = scmp.lt.s32.totalorder %s30, 0
      %s32 = scalar_select %p31, %s30, 0
      %s33 = smul.u32 2, %s32
      %35 = vsyncadd [#allocation6], 0
      %s36 = smul.addr %s33, 8
      %s37 = scalar_lea.hbm %s1, %s36
      %s38 = sshll.u32 %s37, 4
      %s39 = int_to_ptr.hbm [resolvable:$true] %s38
      %s40 = sshll.u32 [#allocation5], 4
      %s41 = int_to_ptr.vmem [resolvable:$true] %s40
      %46 = dma.hbm_to_vmem [thread:$0]  %s39, 256, %s41, [#allocation6], 128, 128, 8
    $region9: #{soft_cross_entropy_loss.1} parent=1 // pred_fallthru
      _
    // Predicated region
    $region10: #{soft_cross_entropy_loss.1} parent=1 // pred_check
      _
    $region11: #{soft_cross_entropy_loss.1} parent=1 // pred_check_branch
      %48 = sbr.rel (0) target = $region13
    $region12: #{soft_cross_entropy_loss.1} parent=1 // pred_region
      %50 = dma.done [#allocation4], 256
    $region13: #{soft_cross_entropy_loss.1} parent=1 // pred_fallthru
      _
    // Predicated region
    $region14: #{soft_cross_entropy_loss.1} parent=1 // pred_check
      _
    $region15: #{soft_cross_entropy_loss.1} parent=1 // pred_check_branch
      %52 = sbr.rel (0) target = $region17
    $region16: #{soft_cross_entropy_loss.1} parent=1 // pred_region
      %54 = dma.done [#allocation6], 256
    $region17: #{soft_cross_entropy_loss.1} parent=1 // pred_fallthru
      _
    %s55 = sadd.s32 0, 0
    %p56 = scmp.lt.s32.totalorder %s55, 0
    %s57 = scalar_select %p56, %s55, 0
    %s58 = smul.u32 2, %s57
    %s59 = sadd.s32 0, 0
    %p60 = scmp.lt.s32.totalorder %s59, 0
    %s61 = scalar_select %p60, %s59, 0
    %s62 = smul.u32 2, %s61
    %p63 = scmp.eq.s32.totalorder 0, 0
    // Predicated region
    $region18: #{soft_cross_entropy_loss.1} parent=1 // pred_check
      %p64 = pneg %p63
    $region19: #{soft_cross_entropy_loss.1} parent=1 // pred_check_branch
      %66 = sbr.rel (%p64) target = $region21
    $region20: #{soft_cross_entropy_loss.1} parent=1 // pred_region
      %vm67 = vcmask 0
      %68 = vst.msk [vmem:[#allocation2] sm:$0x1] %vm67, 0.0
    $region21: #{soft_cross_entropy_loss.1} parent=1 // pred_fallthru
      _
    %v69 = vld [vmem:[#allocation3] sm:$0xff]
    %v70 = vld [vmem:[#allocation3 + $0x8] sm:$0xff]
    %vm71 = vcmask 261120
    %v72 = vsel %vm71, %v69, -inf
    %73 = vmax.xlane.f32.xlu0 %v72
    %v74 = vpop.xlane.xlu0 %73
    %v75 = vsel %vm71, %v70, -inf
    %76 = vmax.xlane.f32.xlu0 %v75
    %v77 = vpop.xlane.xlu0 %76
    %v78 = vsub.f32 %v69, %v74
    %v79 = vsub.f32 %v70, %v77
    %v80 = vmul.f32 %v78, 1.442695
    %v81 = vpow.pop %v80
    %v82 = vmul.f32 %v79, 1.442695
    %v83 = vpow.pop %v82
    %v84 = vsel %vm71, %v81, 0.0
    %85 = vadd.xlane.f32.xlu0 %v84
    %v86 = vpop.xlane.xlu0 %85
    %v87 = vsel %vm71, %v83, 0.0
    %88 = vadd.xlane.f32.xlu0 %v87
    %v89 = vpop.xlane.xlu0 %88
    %v90 = vlog2.pop %v86
    %v91 = vmul.f32 %v90, 0.6931472
    %v92 = vlog2.pop %v89
    %v93 = vmul.f32 %v92, 0.6931472
    %v94 = vld [vmem:[#allocation5] sm:$0xff]
    %v95 = vld [vmem:[#allocation5 + $0x8] sm:$0xff]
    %v96 = vmul.f32 %v78, %v94
    %v97 = vmul.f32 %v79, %v95
    %v98 = vsel %vm71, %v96, 0.0
    %99 = vadd.xlane.f32.xlu0 %v98
    %v100 = vpop.xlane.xlu0 %99
    %v101 = vsel %vm71, %v97, 0.0
    %102 = vadd.xlane.f32.xlu0 %v101
    %v103 = vpop.xlane.xlu0 %102
    %v104 = vsel %vm71, %v94, 0.0
    %105 = vadd.xlane.f32.xlu0 %v104
    %v106 = vpop.xlane.xlu0 %105
    %v107 = vsel %vm71, %v95, 0.0
    %108 = vadd.xlane.f32.xlu0 %v107
    %v109 = vpop.xlane.xlu0 %108
    %v110 = vmul.f32 %v91, %v106
    %v111 = vmul.f32 %v93, %v109
    %v112 = vsub.f32 %v110, %v100
    %v113 = vsub.f32 %v111, %v103
    %s114 = sadd.s32 0, 0
    %s115 = smul.u32 %s114, 16
    %s116 = sadd.s32 %s115, 16
    %p117 = scmp.le.s32.totalorder %s116, 16
    // Predicated region
    $region22: #{soft_cross_entropy_loss.1} parent=1 // pred_check
      %p118 = pneg %p117
    $region23: #{soft_cross_entropy_loss.1} parent=1 // pred_check_branch
      %120 = sbr.rel (%p118) target = $region25
    $region24: #{soft_cross_entropy_loss.1} parent=1 // pred_region
      %v121 = vld [vmem:[#allocation2] sm:$0x1]
      %vm122 = vcmask 7168
      %v123 = vsel %vm122, %v112, 0.0
      %v124 = vsel %vm122, %v113, 0.0
      %v125 = vadd.f32 %v123, %v124
      %126 = vadd.xlane.f32.xlu0 %v125
      %v127 = vpop.xlane.xlu0 %126
      %v128 = vrot.slane %v127, 4
      %v129 = vadd.f32 %v127, %v128
      %v130 = vrot.slane %v129, 2
      %v131 = vadd.f32 %v129, %v130
      %v132 = vrot.slane %v131, 1
      %v133 = vadd.f32 %v131, %v132
      %s134 = vtos %v133
      %v135 = vstv %s134
      %v136 = vadd.f32 %v121, %v135
      %vm137 = vcmask 0
      %138 = vst.msk [vmem:[#allocation2] sm:$0x1] %vm137, %v136
    $region25: #{soft_cross_entropy_loss.1} parent=1 // pred_fallthru
      _
    %p139 = scmp.gt.s32.totalorder %s116, 16
    // Predicated region
    $region26: #{soft_cross_entropy_loss.1} parent=1 // pred_check
      %p140 = pneg %p139
    $region27: #{soft_cross_entropy_loss.1} parent=1 // pred_check_branch
      %142 = sbr.rel (%p140) target = $region29
    $region28: #{soft_cross_entropy_loss.1} parent=1 // pred_region
      %v143 = vlaneseq
      %v144 = vshrl.u32 %v143, 7
      %v145 = vadd.s32 %v144, 8
      %v146 = vstv %s115
      %v147 = vadd.s32 %v146, %v144
      %v148 = vadd.s32 %v146, %v145
      %v149 = vld [vmem:[#allocation2] sm:$0x1]
      %vm150 = vcmp.lt.s32.totalorder %v147, 16
      %vm151 = vcmp.lt.s32.totalorder %v148, 16
      %v152 = vsel %vm150, %v112, 0.0
      %v153 = vsel %vm151, %v113, 0.0
      %vm154 = vcmask 7168
      %v155 = vsel %vm154, %v152, 0.0
      %v156 = vsel %vm154, %v153, 0.0
      %v157 = vadd.f32 %v155, %v156
      %158 = vadd.xlane.f32.xlu0 %v157
      %v159 = vpop.xlane.xlu0 %158
      %v160 = vrot.slane %v159, 4
      %v161 = vadd.f32 %v159, %v160
      %v162 = vrot.slane %v161, 2
      %v163 = vadd.f32 %v161, %v162
      %v164 = vrot.slane %v163, 1
      %v165 = vadd.f32 %v163, %v164
      %s166 = vtos %v165
      %v167 = vstv %s166
      %v168 = vadd.f32 %v149, %v167
      %vm169 = vcmask 0
      %170 = vst.msk [vmem:[#allocation2] sm:$0x1] %vm169, %v168
    $region29: #{soft_cross_entropy_loss.1} parent=1 // pred_fallthru
      _
    // Predicated region
    $region30: #{soft_cross_entropy_loss.1} parent=1 // pred_check
      %p171 = pneg %p63
    $region31: #{soft_cross_entropy_loss.1} parent=1 // pred_check_branch
      %173 = sbr.rel (%p171) target = $region33
    $region32: #{soft_cross_entropy_loss.1} parent=1 // pred_region
      %v174 = vld [vmem:[#allocation2] sm:$0x1]
      %v175 = vadd.f32 %v174, 0.0
      %s176 = vtos %v175
      %v177 = vstv %s176
      %178 = vst [vmem:[%s2] sm:$0xff] %v177
    $region33: #{soft_cross_entropy_loss.1} parent=1 // pred_fallthru
      _
    // Predicated region
    $region34: #{soft_cross_entropy_loss.1} parent=1 // pred_check
      _
    $region35: #{soft_cross_entropy_loss.1} parent=1 // pred_check_branch
      %180 = sbr.rel (0) target = $region37
    $region36: #{soft_cross_entropy_loss.1} parent=1 // pred_region
      _
    $region37: #{soft_cross_entropy_loss.1} parent=1 // pred_fallthru
      _
    // Predicated region
    $region38: #{soft_cross_entropy_loss.1} parent=1 // pred_check
      _
    $region39: #{soft_cross_entropy_loss.1} parent=1 // pred_check_branch
      %182 = sbr.rel (0) target = $region41
    $region40: #{soft_cross_entropy_loss.1} parent=1 // pred_region
      _
    $region41: #{soft_cross_entropy_loss.1} parent=1 // pred_fallthru
      _
    %183 = vsyncpa [#allocation4], 1
    %184 = vsyncpa [#allocation6], 1

</llo_original>
